<compile_context>
chip_gen: v7x
topology: tpu7x:2x2x1
jax: 0.10.0
libtpu: 0.0.40
codegen_flags: <defaults>
</compile_context>

<pallas_src>
import functools

import jax
import jax.numpy as jnp
from jax.experimental import pallas as pl
from jax.experimental.pallas import tpu as pltpu

ALPHA = 0.65
NUM_CLASSES = 10
EPS = 1e-7          # unused by the torch forward; kept for parity with __init__
SCALE = 1.0
TN_DEFAULT = 1024   # samples per grid step (lane axis), multiple of 128
NUM_SPLITS = 2      # leading "parallel" grid axis (v7x: one half per TensorCore)


def _round_up(x, m):
    return ((x + m - 1) // m) * m


def _rcll_kernel(logthr_ref, pred_ref, labels_ref, out_ref, *, alpha, num_classes):
    # grid = (NUM_SPLITS [parallel], tiles_per_split [arbitrary/reduction])
    i = pl.program_id(1)

    @pl.when(i == 0)
    def _init():
        out_ref[...] = jnp.zeros_like(out_ref)

    log_thr = logthr_ref[0]                                   # scalar: log(1/K)
    logits = pred_ref[...]                                    # (C, TN) f32, samples on lanes
    labels = labels_ref[...]                                  # (1, TN) int32, -1 = padding
    valid = (labels >= 0).astype(jnp.float32)                 # (1, TN)

    # log-softmax over the class (sublane) axis — no divide, no probs materialization
    m = jnp.max(logits, axis=0, keepdims=True)                # (1, TN)
    lse = m + jnp.log(jnp.sum(jnp.exp(logits - m), axis=0, keepdims=True))
    logp = logits - lse                                       # (C, TN)

    # clipped / normal element counts per sample
    clip_cnt = jnp.sum((logp <= log_thr).astype(jnp.float32), axis=0, keepdims=True)
    normal_cnt = float(num_classes) - clip_cnt                # (1, TN)

    # logp at the true label via class-iota compare (replaces the one-hot stream)
    cls = jax.lax.broadcasted_iota(jnp.int32, logits.shape, 0)            # (C, TN)
    logp_true = jnp.sum(jnp.where(cls == labels, logp, 0.0),
                        axis=0, keepdims=True)                            # (1, TN)
    neglogp = jnp.maximum(-logp_true, 0.0)                    # clamp: lse >= logit up to rounding
    p_true = jnp.exp(logp_true)
    term = jnp.power(neglogp, alpha) * (1.0 - p_true)         # (1, TN)

    # per-lane partial sums, accumulated into the resident output block:
    #   row 0: clipped-element count, row 1: normal-element count, row 2: cnt-weighted term
    update = jnp.concatenate(
        [valid * clip_cnt,
         valid * normal_cnt,
         valid * normal_cnt * term], axis=0)                  # (3, TN)
    out_ref[...] += update[None]                              # (1, 3, TN)


def rcll_loss(pred, labels, *, alpha=ALPHA, num_classes=NUM_CLASSES, scale=SCALE,
              tn=TN_DEFAULT, num_splits=NUM_SPLITS):
    n, c = pred.shape
    assert c == num_classes
    pred = pred.astype(jnp.float32)
    labels = labels.astype(jnp.int32)

    # K = number of distinct label values present -> threshold = 1/K
    counts = jnp.zeros((num_classes,), jnp.int32).at[labels].add(1)
    k = jnp.sum((counts > 0).astype(jnp.float32))
    thr = 1.0 / k
    log_thr = jnp.asarray([-jnp.log(k)], jnp.float32)         # log(threshold), lives in SMEM

    # tiling: samples on the lane axis, split across num_splits cores
    per_split = max(1, -(-n // num_splits))
    tn_eff = min(tn, _round_up(per_split, 128))
    tiles_per_split = max(1, -(-per_split // tn_eff))
    n_pad = num_splits * tiles_per_split * tn_eff
    pad = n_pad - n

    pred_t = pred.T                                           # (C, N) lane-dense layout
    if pad:
        pred_t = jnp.pad(pred_t, ((0, 0), (0, pad)))
        labels_p = jnp.pad(labels, (0, pad), constant_values=-1)   # -1 marks padded samples
    else:
        labels_p = labels
    labels2d = labels_p.reshape(1, n_pad)

    kernel = functools.partial(_rcll_kernel, alpha=float(alpha), num_classes=num_classes)

    cost = pl.CostEstimate(
        flops=int(n) * (8 * num_classes + 16),
        transcendentals=int(n) * (num_classes + 4),
        bytes_accessed=int(n) * (4 * num_classes + 4) + num_splits * 3 * tn_eff * 4,
    )

    lane_idx = lambda s, i: (0, s * tiles_per_split + i)
    partials = pl.pallas_call(
        kernel,
        out_shape=jax.ShapeDtypeStruct((num_splits, 3, tn_eff), jnp.float32),
        grid_spec=pltpu.PrefetchScalarGridSpec(
            num_scalar_prefetch=0,
            grid=(num_splits, tiles_per_split),
            in_specs=[
                pl.BlockSpec(memory_space=pltpu.MemorySpace.SMEM),       # [log(threshold)]
                pl.BlockSpec((num_classes, tn_eff), lane_idx),           # pred^T tile
                pl.BlockSpec((1, tn_eff), lane_idx),                     # labels tile (int32)
            ],
            out_specs=pl.BlockSpec((1, 3, tn_eff), lambda s, i: (s, 0, 0)),  # per-core partials
        ),
        compiler_params=pltpu.CompilerParams(
            dimension_semantics=("parallel", "arbitrary")),
        cost_estimate=cost,
    )(log_thr, pred_t, labels2d)

    # tiny final reduction + scalar formula (outside the kernel)
    sums = jnp.sum(partials, axis=(0, 2))                     # (3,)
    total_clip, total_normal, weighted = sums[0], sums[1], sums[2]
    const_clip = jnp.power(-jnp.log(thr), jnp.float32(alpha)) * (1.0 - thr)
    # mean over the clipped index list: constant if non-empty, NaN if empty — matches torch
    loss_clip_mean = jnp.where(total_clip > 0.0, const_clip, jnp.float32(jnp.nan))
    loss_normal_mean = weighted / total_normal                # 0/0 -> NaN on empty, matches torch
    return ((loss_clip_mean + loss_normal_mean) * scale).astype(jnp.float32)


def rcll_reference(pred, labels, *, alpha=ALPHA, num_classes=NUM_CLASSES, scale=SCALE):
    """Pure-JAX reference mirroring the torch forward (count-weighted closed form)."""
    probs = jax.nn.softmax(pred.astype(jnp.float32), axis=1)
    onehot = jax.nn.one_hot(labels, num_classes, dtype=jnp.float32)
    k = jnp.sum((jnp.sum(onehot, axis=0) > 0.0).astype(jnp.float32))
    thr = 1.0 / k
    clip_cnt = jnp.sum((probs <= thr).astype(jnp.float32), axis=1)
    normal_cnt = num_classes - clip_cnt
    p_true = jnp.sum(onehot * probs, axis=1)
    term = jnp.power(-jnp.log(p_true), alpha) * (1.0 - p_true)
    const_clip = jnp.power(-jnp.log(thr), alpha) * (1.0 - thr)
    loss_clip_mean = jnp.where(jnp.sum(clip_cnt) > 0, const_clip, jnp.nan)
    loss_normal_mean = jnp.sum(normal_cnt * term) / jnp.sum(normal_cnt)
    return (loss_clip_mean + loss_normal_mean) * scale


if __name__ == "__main__":
    key = jax.random.PRNGKey(0)
    k1, k2 = jax.random.split(key)
    N, C = 64, NUM_CLASSES
    pred = jax.random.normal(k1, (N, C), dtype=jnp.float32) * 2.0
    labels = jax.random.randint(k2, (N,), 0, C, dtype=jnp.int32)

    loss = jax.jit(rcll_loss)(pred, labels)
    loss = jax.block_until_ready(loss)

    ref = rcll_reference(pred, labels)
    assert jnp.allclose(loss, ref, atol=2e-5, rtol=1e-4), (loss, ref)
    print("KERNEL_OK")
</pallas_src>

<mosaic_0001>
module attributes {stable_mosaic.version = 11 : i64} {
  func.func private @main(%arg0: i32) attributes {dimension_semantics = [#tpu.dimension_semantics<core_parallel>], iteration_bounds = array<i64: 2>, tpu.core_type = #tpu.core_type<sc_scalar_subcore>, window_params = []} {
    return
  }
}

module attributes {stable_mosaic.version = 11 : i64} {
  func.func private @main(%arg0: i32) attributes {dimension_semantics = [#tpu.dimension_semantics<core_parallel>], iteration_bounds = array<i64: 2>, tpu.core_type = #tpu.core_type<sc_scalar_subcore>, window_params = []} {
    return
  }
}

module attributes {stable_mosaic.version = 11 : i64} {
  func.func @_rcll_kernel(%arg0: i32, %arg1: i32, %arg2: memref<1xf32, #tpu.memory_space<smem>>, %arg3: memref<10x128xf32, #tpu.memory_space<vmem>>, %arg4: memref<1x128xi32, #tpu.memory_space<vmem>>, %arg5: memref<1x3x128xf32, #tpu.memory_space<vmem>>) attributes {dimension_semantics = [#tpu.dimension_semantics<parallel>, #tpu.dimension_semantics<arbitrary>], iteration_bounds = array<i64: 2, 1>, scalar_prefetch = 0 : i64, scratch_operands = 0 : i64, tpu.core_type = #tpu.core_type<tc>, window_params = [{transform_indices = @transform_0, window_bounds = array<i64: 1>}, {transform_indices = @transform_1, window_bounds = array<i64: 10, 128>}, {transform_indices = @transform_2, window_bounds = array<i64: 1, 128>}, {transform_indices = @transform_3, window_bounds = array<i64: 1, 3, 128>}]} {
    %c0_i32 = arith.constant 0 : i32
    %0 = arith.cmpi eq, %arg1, %c0_i32 : i32
    %1 = arith.extui %0 : i1 to i32
    %c0_i32_0 = arith.constant 0 : i32
    %2 = arith.cmpi ne, %1, %c0_i32_0 : i32
    scf.if %2 {
      %cst_21 = arith.constant 0.000000e+00 : f32
      %55 = vector.broadcast %cst_21 : f32 to vector<1x3x128xf32>
      %c0_22 = arith.constant 0 : index
      %c0_23 = arith.constant 0 : index
      %c0_24 = arith.constant 0 : index
      %56 = vector.load %arg5[%c0_22, %c0_23, %c0_24] : memref<1x3x128xf32, #tpu.memory_space<vmem>>, vector<1x3x128xf32>
      tpu.vector_store %arg5[%c0_22, %c0_23, %c0_24], %55 {strides = array<i32>} : memref<1x3x128xf32, #tpu.memory_space<vmem>>, vector<1x3x128xf32>,
    } else {
    }
    %c0 = arith.constant 0 : index
    %3 = memref.load %arg2[%c0] : memref<1xf32, #tpu.memory_space<smem>>
    %c0_1 = arith.constant 0 : index
    %c0_2 = arith.constant 0 : index
    %4 = vector.load %arg3[%c0_1, %c0_2] : memref<10x128xf32, #tpu.memory_space<vmem>>, vector<10x128xf32>
    %c0_3 = arith.constant 0 : index
    %c0_4 = arith.constant 0 : index
    %5 = vector.load %arg4[%c0_3, %c0_4] : memref<1x128xi32, #tpu.memory_space<vmem>>, vector<1x128xi32>
    %c0_i32_5 = arith.constant 0 : i32
    %6 = vector.broadcast %c0_i32_5 : i32 to vector<1x128xi32>
    %7 = arith.cmpi sge, %5, %6 : vector<1x128xi32>
    %8 = arith.extui %7 : vector<1x128xi1> to vector<1x128xi32>
    %9 = arith.sitofp %8 : vector<1x128xi32> to vector<1x128xf32>
    %cst = arith.constant dense<0xFF800000> : vector<128xf32>
    %10 = vector.multi_reduction <maximumf>, %4, %cst [0] : vector<10x128xf32> to vector<128xf32>
    %11 = vector.shape_cast %10 : vector<128xf32> to vector<1x128xf32>
    %12 = vector.broadcast %11 : vector<1x128xf32> to vector<10x128xf32>
    %13 = arith.subf %4, %12 : vector<10x128xf32>
    %14 = math.exp %13 : vector<10x128xf32>
    %cst_6 = arith.constant dense<0.000000e+00> : vector<128xf32>
    %15 = vector.multi_reduction <add>, %14, %cst_6 [0] : vector<10x128xf32> to vector<128xf32>
    %16 = vector.shape_cast %15 : vector<128xf32> to vector<1x128xf32>
    %17 = math.log %16 : vector<1x128xf32>
    %18 = arith.addf %11, %17 : vector<1x128xf32>
    %19 = vector.broadcast %18 : vector<1x128xf32> to vector<10x128xf32>
    %20 = arith.subf %4, %19 : vector<10x128xf32>
    %21 = vector.broadcast %3 : f32 to vector<10x128xf32>
    %22 = arith.cmpf ole, %20, %21 : vector<10x128xf32>
    %23 = arith.extui %22 : vector<10x128xi1> to vector<10x128xi32>
    %24 = arith.sitofp %23 : vector<10x128xi32> to vector<10x128xf32>
    %cst_7 = arith.constant dense<0.000000e+00> : vector<128xf32>
    %25 = vector.multi_reduction <add>, %24, %cst_7 [0] : vector<10x128xf32> to vector<128xf32>
    %26 = vector.shape_cast %25 : vector<128xf32> to vector<1x128xf32>
    %cst_8 = arith.constant 1.000000e+01 : f32
    %27 = vector.broadcast %cst_8 : f32 to vector<1x128xf32>
    %28 = arith.subf %27, %26 : vector<1x128xf32>
    %29 = tpu.iota {dimensions = array<i32: 0>} : vector<10x128xi32>
    %30 = vector.broadcast %5 : vector<1x128xi32> to vector<10x128xi32>
    %31 = arith.cmpi eq, %29, %30 : vector<10x128xi32>
    %cst_9 = arith.constant 0.000000e+00 : f32
    %32 = vector.broadcast %cst_9 : f32 to vector<10x128xf32>
    %33 = arith.select %31, %20, %32 : vector<10x128xi1>, vector<10x128xf32>
    %cst_10 = arith.constant dense<0.000000e+00> : vector<128xf32>
    %34 = vector.multi_reduction <add>, %33, %cst_10 [0] : vector<10x128xf32> to vector<128xf32>
    %35 = vector.shape_cast %34 : vector<128xf32> to vector<1x128xf32>
    %cst_11 = arith.constant 0.000000e+00 : f32
    %36 = vector.broadcast %cst_11 : f32 to vector<1x128xf32>
    %37 = arith.subf %36, %35 : vector<1x128xf32>
    %cst_12 = arith.constant 0.000000e+00 : f32
    %38 = vector.broadcast %cst_12 : f32 to vector<1x128xf32>
    %39 = arith.maximumf %37, %38 : vector<1x128xf32>
    %40 = math.exp %35 : vector<1x128xf32>
    %cst_13 = arith.constant 6.500000e-01 : f32
    %41 = vector.broadcast %cst_13 : f32 to vector<1x128xf32>
    %42 = math.powf %39, %41 : vector<1x128xf32>
    %cst_14 = arith.constant 1.000000e+00 : f32
    %43 = vector.broadcast %cst_14 : f32 to vector<1x128xf32>
    %44 = arith.subf %43, %40 : vector<1x128xf32>
    %45 = arith.mulf %42, %44 : vector<1x128xf32>
    %46 = arith.mulf %9, %26 : vector<1x128xf32>
    %47 = arith.mulf %9, %28 : vector<1x128xf32>
    %48 = arith.mulf %9, %28 : vector<1x128xf32>
    %49 = arith.mulf %48, %45 : vector<1x128xf32>
    %50 = tpu.concatenate %46, %47, %49 in 0 : vector<1x128xf32>, vector<1x128xf32>, vector<1x128xf32> -> vector<3x128xf32>
    %c0_15 = arith.constant 0 : index
    %c0_16 = arith.constant 0 : index
    %c0_17 = arith.constant 0 : index
    %51 = vector.load %arg5[%c0_15, %c0_16, %c0_17] : memref<1x3x128xf32, #tpu.memory_space<vmem>>, vector<1x3x128xf32>
    %52 = vector.shape_cast %50 : vector<3x128xf32> to vector<1x3x128xf32>
    %53 = arith.addf %51, %52 : vector<1x3x128xf32>
    %c0_18 = arith.constant 0 : index
    %c0_19 = arith.constant 0 : index
    %c0_20 = arith.constant 0 : index
    %54 = vector.load %arg5[%c0_18, %c0_19, %c0_20] : memref<1x3x128xf32, #tpu.memory_space<vmem>>, vector<1x3x128xf32>
    tpu.vector_store %arg5[%c0_18, %c0_19, %c0_20], %53 {strides = array<i32>} : memref<1x3x128xf32, #tpu.memory_space<vmem>>, vector<1x3x128xf32>,
    return
  }
  func.func @transform_0(%arg0: i32, %arg1: i32) -> i32 {
    %c0_i32 = arith.constant 0 : i32
    %c0_i32_0 = arith.constant 0 : i32
    return %c0_i32 : i32
  }
  func.func @transform_1(%arg0: i32, %arg1: i32) -> (i32, i32) {
    %c1_i32 = arith.constant 1 : i32
    %0 = arith.muli %arg0, %c1_i32 : i32
    %1 = arith.addi %0, %arg1 : i32
    %c0_i32 = arith.constant 0 : i32
    %c0_i32_0 = arith.constant 0 : i32
    return %c0_i32, %1 : i32, i32
  }
  func.func @transform_2(%arg0: i32, %arg1: i32) -> (i32, i32) {
    %c1_i32 = arith.constant 1 : i32
    %0 = arith.muli %arg0, %c1_i32 : i32
    %1 = arith.addi %0, %arg1 : i32
    %c0_i32 = arith.constant 0 : i32
    %c0_i32_0 = arith.constant 0 : i32
    return %c0_i32, %1 : i32, i32
  }
  func.func @transform_3(%arg0: i32, %arg1: i32) -> (i32, i32, i32) {
    %c0_i32 = arith.constant 0 : i32
    %c0_i32_0 = arith.constant 0 : i32
    %c0_i32_1 = arith.constant 0 : i32
    return %arg0, %c0_i32, %c0_i32_0 : i32, i32, i32
  }
}

</mosaic_0001>

<llo_original>
// kernel: rcll_loss.1
$region0: #{rcll_loss.1}
  #allocation0 [shape = 'u32[]', space=smem, size = 0x4, offset = 0x4, fixed_abs, tag = 'smem constant byte address 0x4 - core index']
  #allocation1 [shape = 'u32[144,128]{1,0:T(1,128)}', space=vmem, size = 0x12000, scoped, tag = 'internal scratch']
  #allocation2 [shape = 'f32[1]{0:T(128)S(6)}', space=smem, size = 0x200, scoped, tag = 'scoped memory for rcll_loss.1']
  %s0 = inlined_call_operand.<no memory space> [shape: f32[1], index: 0, kind: input, shape index: {}]
  %s1 = inlined_call_operand.vmem [shape: f32[10,256], index: 1, kind: input, shape index: {}]
  %s2 = inlined_call_operand.vmem [shape: s32[1,256], index: 2, kind: input, shape index: {}]
  %s3 = inlined_call_operand.vmem [shape: f32[2,3,128], index: 3, kind: output, shape index: {}]
  %s4 = sld [smem:[#allocation0]]
  $region87: #{rcll_loss.1} parent=0
    _
  %s6 = ssub.s32 1, %s4
  %s7 = scalar_select 0, %s6, %s4
  %8 = sst [smem:[#allocation2]] %s0
  $region1: #{rcll_loss.1} parent=0
    #allocation3 [shape = 'u8[16384]{0}', space=vmem, size = 0x4000, scoped, tag = 'input window, operand 1']
    loop: start=0, step=1, limit=4
    $region2: #{rcll_loss.1} parent=1 // loop_pre_header
      _
    $region3: #{rcll_loss.1} parent=1 // loop_header
      %s10 = sphi 0, %s14
      %p11 = scmp.ge.s32.totalorder %s10, 4
      %s17 = sphi 0, %s29
      %s18 = sphi 0, %s25
      %s19 = sphi 0, %s17
      %s20 = sphi 0, %s18
      %s21 = sphi 0, %s19
      %s22 = sphi 0, %s20
      %s30 = sphi 0, %s30
      %s32 = sphi 0, %s30
      %s33 = sphi 0, %s32
      %s47 = sphi 0, %s33
      %s55 = sphi 0, %s57
      %s58 = sphi 0, %s55
      %s59 = sphi 0, %s58
      %s75 = sphi 0, %s59
      %s83 = sphi 0, %s85
      %s86 = sphi 0, %s83
      %s87 = sphi 0, %s86
      %s103 = sphi 0, %s87
      %s109 = sphi 0, %s111
      %s112 = sphi 0, %s109
      %s113 = sphi 0, %s112
      %s129 = sphi 0, %s113
    $region4: #{rcll_loss.1} parent=1 // loop_header_branch
      %13 = sbr.rel (%p11) target = $region8
    $region5: #{rcll_loss.1} parent=1 // loop_body
      %s15 = ssub.s32 %s10, 1
      %s16 = ssub.s32 %s10, 2
      %s23 = sadd.s32 1, %s18
      %p24 = scmp.ge.s32.totalorder %s23, 1
      %s25 = scalar_select %p24, 0, %s23
      %s26 = sadd.s32 1, %s17
      %s27 = scalar_select %p24, %s26, %s17
      %p28 = scmp.ge.s32.totalorder %s27, 2
      %s29 = scalar_select %p28, 0, %s27
      %s31 = sadd.s32 %s30, 1
      %p34 = scmp.eq.s32.totalorder %s10, 1
      %p35 = scmp.ne.s32.totalorder %s30, %s32
      %p36 = scmp.eq.s32.totalorder %s10, 0
      %p37 = por %p35, %p36
      %p38 = scmp.ne.s32.totalorder %s30, %s32
      %p39 = scmp.eq.s32.totalorder %s15, 1
      %p40 = por %p38, %p39
      %p41 = scmp.ne.s32.totalorder %s32, %s33
      %p42 = scmp.eq.s32.totalorder %s15, 0
      %p43 = por %p41, %p42
      %p44 = scmp.ne.s32.totalorder %s32, %s33
      %p45 = scmp.eq.s32.totalorder %s16, 1
      %p46 = por %p44, %p45
      %p48 = scmp.ne.s32.totalorder %s33, %s47
      %p49 = scmp.eq.s32.totalorder %s16, 0
      %p50 = por %p48, %p49
      %s51 = sadd.s32 %s17, %s18
      %s52 = sadd.s32 %s29, %s25
      %s53 = ssub.s32 %s51, %s52
      %p54 = scmp.eq.s32.totalorder %s53, 0
      %s56 = sadd.s32 %s55, 1
      %s57 = scalar_select %p54, %s55, %s56
      %p60 = pneg %p54
      %p61 = scmp.eq.s32.totalorder %s10, 1
      %p62 = por %p60, %p61
      %p63 = scmp.ne.s32.totalorder %s55, %s58
      %p64 = scmp.eq.s32.totalorder %s10, 0
      %p65 = por %p63, %p64
      %p66 = scmp.ne.s32.totalorder %s55, %s58
      %p67 = scmp.eq.s32.totalorder %s15, 1
      %p68 = por %p66, %p67
      %p69 = scmp.ne.s32.totalorder %s58, %s59
      %p70 = scmp.eq.s32.totalorder %s15, 0
      %p71 = por %p69, %p70
      %p72 = scmp.ne.s32.totalorder %s58, %s59
      %p73 = scmp.eq.s32.totalorder %s16, 1
      %p74 = por %p72, %p73
      %p76 = scmp.ne.s32.totalorder %s59, %s75
      %p77 = scmp.eq.s32.totalorder %s16, 0
      %p78 = por %p76, %p77
      %s79 = sadd.s32 %s17, %s18
      %s80 = sadd.s32 %s29, %s25
      %s81 = ssub.s32 %s79, %s80
      %p82 = scmp.eq.s32.totalorder %s81, 0
      %s84 = sadd.s32 %s83, 1
      %s85 = scalar_select %p82, %s83, %s84
      %p88 = pneg %p82
      %p89 = scmp.eq.s32.totalorder %s10, 1
      %p90 = por %p88, %p89
      %p91 = scmp.ne.s32.totalorder %s83, %s86
      %p92 = scmp.eq.s32.totalorder %s10, 0
      %p93 = por %p91, %p92
      %p94 = scmp.ne.s32.totalorder %s83, %s86
      %p95 = scmp.eq.s32.totalorder %s15, 1
      %p96 = por %p94, %p95
      %p97 = scmp.ne.s32.totalorder %s86, %s87
      %p98 = scmp.eq.s32.totalorder %s15, 0
      %p99 = por %p97, %p98
      %p100 = scmp.ne.s32.totalorder %s86, %s87
      %p101 = scmp.eq.s32.totalorder %s16, 1
      %p102 = por %p100, %p101
      %p104 = scmp.ne.s32.totalorder %s87, %s103
      %p105 = scmp.eq.s32.totalorder %s16, 0
      %p106 = por %p104, %p105
      %s107 = ssub.s32 %s17, %s29
      %p108 = scmp.eq.s32.totalorder %s107, 0
      %s110 = sadd.s32 %s109, 1
      %s111 = scalar_select %p108, %s109, %s110
      %p114 = pneg %p108
      %p115 = scmp.eq.s32.totalorder %s10, 1
      %p116 = por %p114, %p115
      %p117 = scmp.ne.s32.totalorder %s109, %s112
      %p118 = scmp.eq.s32.totalorder %s10, 0
      %p119 = por %p117, %p118
      %p120 = scmp.ne.s32.totalorder %s109, %s112
      %p121 = scmp.eq.s32.totalorder %s15, 1
      %p122 = por %p120, %p121
      %p123 = scmp.ne.s32.totalorder %s112, %s113
      %p124 = scmp.eq.s32.totalorder %s15, 0
      %p125 = por %p123, %p124
      %p126 = scmp.ne.s32.totalorder %s112, %s113
      %p127 = scmp.eq.s32.totalorder %s16, 1
      %p128 = por %p126, %p127
      %p130 = scmp.ne.s32.totalorder %s113, %s129
      %p131 = scmp.eq.s32.totalorder %s16, 0
      %p132 = por %p130, %p131
      %p133 = scmp.le.s32.totalorder 1, %s10
      %p134 = scmp.lt.s32.totalorder %s10, 3
      %p135 = pnand %p133, %p134
      %p136 = pneg %p135
      // Predicated region
      $region9: #{rcll_loss.1} parent=5 // pred_check
        _
      $region10: #{rcll_loss.1} parent=5 // pred_check_branch
        %138 = sbr.rel (%p135) target = $region12
      $region11: #{rcll_loss.1} parent=5 // pred_region
        %s139 = ssub.s32 %s10, 1
        // Predicated region
        $region13: #{rcll_loss.1} parent=11 // pred_check
          %p140 = pneg %p43
        $region14: #{rcll_loss.1} parent=11 // pred_check_branch
          %142 = sbr.rel (%p140) target = $region16
        $region15: #{rcll_loss.1} parent=11 // pred_region
          _
        $region16: #{rcll_loss.1} parent=11 // pred_fallthru
          _
      $region12: #{rcll_loss.1} parent=5 // pred_fallthru
        _
      %p143 = scmp.lt.s32.totalorder %s10, 2
      // Predicated region
      $region17: #{rcll_loss.1} parent=5 // pred_check
        %p144 = pneg %p143
      $region18: #{rcll_loss.1} parent=5 // pred_check_branch
        %146 = sbr.rel (%p144) target = $region20
      $region19: #{rcll_loss.1} parent=5 // pred_region
        // Predicated region
        $region21: #{rcll_loss.1} parent=19 // pred_check
          %p147 = pneg %p65
        $region22: #{rcll_loss.1} parent=19 // pred_check_branch
          %149 = sbr.rel (%p147) target = $region24
        $region23: #{rcll_loss.1} parent=19 // pred_region
          %s150 = sand.u32 %s55, 1
          %s151 = sand.u32 %s55, 1
          %s152 = smul.addr %s151, 16
          %s153 = scalar_lea.vmem [#allocation3], %s152
          %s154 = sadd.s32 %s17, %s18
          %s155 = smul.addr %s154, 8
          %s156 = scalar_lea.vmem %s1, %s155
          // Predicated region
          $region25: #{rcll_loss.1} parent=23 // pred_check
            _
          $region26: #{rcll_loss.1} parent=23 // pred_check_branch
            %158 = sbr.rel (0) target = $region28
          $region27: #{rcll_loss.1} parent=23 // pred_region
            // Predicated region
            $region29: #{rcll_loss.1} parent=27 // pred_check
              _
            $region30: #{rcll_loss.1} parent=27 // pred_check_branch
              %160 = sbr.rel (0) target = $region32
            $region31: #{rcll_loss.1} parent=27 // pred_region
              // Predicated region
              $region44: #{rcll_loss.1} parent=31 // pred_check
                _
              $region45: #{rcll_loss.1} parent=31 // pred_check_branch
                %177 = sbr.rel (0) target = $region47
              $region46: #{rcll_loss.1} parent=31 // pred_region
                loop: start=0, step=1, limit=1
                $region48: #{rcll_loss.1} parent=46 // loop_pre_header
                  _
                $region49: #{rcll_loss.1} parent=46 // loop_header
                  %s179 = sphi 0, %s183
                  %p180 = scmp.ge.s32.totalorder %s179, 1
                  %s184 = sphi %s156, %s156
                  %s185 = sphi %s153, %s153
                $region50: #{rcll_loss.1} parent=46 // loop_header_branch
                  %182 = sbr.rel (%p180) target = $region54
                $region51: #{rcll_loss.1} parent=46 // loop_body
                  %v186 = vld [vmem:[%s184] sm:$0xff]
                  %187 = vst [vmem:[%s185] sm:$0xff] %v186
                  %v188 = vld [vmem:[%s184 + $0x10] sm:$0xff]
                  %189 = vst [vmem:[%s185 + $0x8] sm:$0xff] %v188
                $region52: #{rcll_loss.1} parent=46 // loop_footer
                  %s183 = sadd.s32 1, %s179
                $region53: #{rcll_loss.1} parent=46 // loop_footer_branch
                  %178 = sbr.rel target = $region49
                $region54: #{rcll_loss.1} parent=46 // loop_exit
                  _
              $region47: #{rcll_loss.1} parent=31 // pred_fallthru
                _
              // Predicated region
              $region55: #{rcll_loss.1} parent=31 // pred_check
                _
              $region56: #{rcll_loss.1} parent=31 // pred_check_branch
                %191 = sbr.rel target = $region58
              $region57: #{rcll_loss.1} parent=31 // pred_region
                _
              $region58: #{rcll_loss.1} parent=31 // pred_fallthru
                _
            $region32: #{rcll_loss.1} parent=27 // pred_fallthru
              _
            // Predicated region
            $region33: #{rcll_loss.1} parent=27 // pred_check
              _
            $region34: #{rcll_loss.1} parent=27 // pred_check_branch
              %162 = sbr.rel target = $region36
            $region35: #{rcll_loss.1} parent=27 // pred_region
              loop: start=0, step=1, limit=1
              $region37: #{rcll_loss.1} parent=35 // loop_pre_header
                _
              $region38: #{rcll_loss.1} parent=35 // loop_header
                %s165 = sphi 0, %s169
                %p166 = scmp.ge.s32.totalorder %s165, 1
                %s170 = sphi %s156, %s156
                %s171 = sphi %s153, %s153
              $region39: #{rcll_loss.1} parent=35 // loop_header_branch
                %168 = sbr.rel (%p166) target = $region43
              $region40: #{rcll_loss.1} parent=35 // loop_body
                %v172 = vld [vmem:[%s170] sm:$0xff]
                %173 = vst [vmem:[%s171] sm:$0xff] %v172
                %v174 = vld [vmem:[%s170 + $0x10] sm:$0xff]
                %175 = vst [vmem:[%s171 + $0x8] sm:$0xff] %v174
              $region41: #{rcll_loss.1} parent=35 // loop_footer
                %s169 = sadd.s32 1, %s165
              $region42: #{rcll_loss.1} parent=35 // loop_footer_branch
                %164 = sbr.rel target = $region38
              $region43: #{rcll_loss.1} parent=35 // loop_exit
                _
            $region36: #{rcll_loss.1} parent=27 // pred_fallthru
              _
          $region28: #{rcll_loss.1} parent=23 // pred_fallthru
            _
          %192 = vnop
        $region24: #{rcll_loss.1} parent=19 // pred_fallthru
          _
        // Predicated region
        $region59: #{rcll_loss.1} parent=19 // pred_check
          %p193 = pneg %p93
        $region60: #{rcll_loss.1} parent=19 // pred_check_branch
          %195 = sbr.rel (%p193) target = $region62
        $region61: #{rcll_loss.1} parent=19 // pred_region
          %s196 = sadd.s32 %s17, %s18
          %p197 = scmp.lt.s32.totalorder %s196, 1
          %s198 = scalar_select %p197, %s196, 1
          %s199 = scalar_lea.vmem %s2, %s198
          %s200 = sadd.s32 %s17, %s18
        $region62: #{rcll_loss.1} parent=19 // pred_fallthru
          _
      $region20: #{rcll_loss.1} parent=5 // pred_fallthru
        _
      %p201 = scmp.le.s32.totalorder 1, %s10
      %p202 = scmp.lt.s32.totalorder %s10, 3
      %p203 = pnand %p201, %p202
      %p204 = pneg %p203
      // Predicated region
      $region63: #{rcll_loss.1} parent=5 // pred_check
        _
      $region64: #{rcll_loss.1} parent=5 // pred_check_branch
        %206 = sbr.rel (%p203) target = $region66
      $region65: #{rcll_loss.1} parent=5 // pred_region
        %s207 = ssub.s32 %s10, 1
        %s208 = sand.u32 %s58, 1
        %s209 = sand.u32 %s58, 1
        %s210 = smul.addr %s209, 16
        %s211 = scalar_lea.vmem [#allocation3], %s210
        // Predicated region
        $region67: #{rcll_loss.1} parent=65 // pred_check
          %p212 = pneg %p71
        $region68: #{rcll_loss.1} parent=65 // pred_check_branch
          %214 = sbr.rel (%p212) target = $region70
        $region69: #{rcll_loss.1} parent=65 // pred_region
          _
        $region70: #{rcll_loss.1} parent=65 // pred_fallthru
          _
        %p215 = pneg %p43
        %p216 = pneg %p40
        %s217 = sand.u32 %s58, 1
        %s218 = sand.u32 %s58, 1
        %s219 = smul.addr %s218, 16
        %s220 = scalar_lea.vmem [#allocation3], %s219
        %p221 = pneg %p71
        %p222 = pneg %p68
        %s223 = sadd.s32 %s19, %s20
        %p224 = scmp.lt.s32.totalorder %s223, 1
        %s225 = scalar_select %p224, %s223, 1
        %s226 = scalar_lea.vmem %s2, %s225
        %p227 = pneg %p99
        %p228 = pneg %p96
        %p229 = pneg %p125
        %p230 = pneg %p122
        %p231 = scmp.lt.s32.totalorder %s19, 1
        %s232 = scalar_select %p231, %s19, 1
        %s233 = smul.addr %s232, 4
        %s234 = scalar_lea.vmem %s3, %s233
        %s235 = sadd.s32 %s19, %s20
        %s236 = sadd.s32 %s19, %s20
        %p237 = scmp.lt.s32.totalorder %s236, 1
        %s238 = scalar_select %p237, %s236, 1
        %s239 = scalar_lea.vmem %s2, %s238
        %s240 = sadd.s32 %s19, %s20
        %p241 = scmp.lt.s32.totalorder %s19, 1
        %s242 = scalar_select %p241, %s19, 1
        %s243 = smul.addr %s242, 4
        %s244 = scalar_lea.vmem %s3, %s243
        %p245 = scmp.eq.s32.totalorder %s20, 0
        // Predicated region
        $region71: #{rcll_loss.1} parent=65 // pred_check
          %p246 = pneg %p245
        $region72: #{rcll_loss.1} parent=65 // pred_check_branch
          %248 = sbr.rel (%p246) target = $region74
        $region73: #{rcll_loss.1} parent=65 // pred_region
          %249 = vst [vmem:[%s244] sm:$0x7] 0.0
        $region74: #{rcll_loss.1} parent=65 // pred_fallthru
          _
        %s250 = sld [smem:[#allocation2]]
        %v251 = vld [vmem:[%s211] sm:$0xff]
        %v252 = vld [vmem:[%s211 + $0x8] sm:$0x3]
        %v253 = vld [vmem:[%s239] sm:$0x1]
        %vm254 = vcmp.ge.s32.totalorder %v253, 0
        %v255 = vsel %vm254, 1, 0
        %v256 = vcvt.s32.f32 %v255
        %vm257 = vcmask 1041408
        %v258 = vsel %vm257, %v252, -inf
        %v259 = vmax.f32 %v251, %v258
        %v260 = vrot.slane %v259, 4
        %v261 = vmax.f32 %v259, %v260
        %v262 = vrot.slane %v261, 2
        %v263 = vmax.f32 %v261, %v262
        %v264 = vrot.slane %v263, 1
        %v265 = vmax.f32 %v263, %v264
        %v266 = vsub.f32 %v251, %v265
        %v267 = vsub.f32 %v252, %v265
        %v268 = vmul.f32 %v266, 1.442695
        %v269 = vpow.pop %v268
        %v270 = vmul.f32 %v267, 1.442695
        %v271 = vpow.pop %v270
        %v272 = vsel %vm257, %v271, 0.0
        %v273 = vadd.f32 %v269, %v272
        %v274 = vrot.slane %v273, 4
        %v275 = vadd.f32 %v273, %v274
        %v276 = vrot.slane %v275, 2
        %v277 = vadd.f32 %v275, %v276
        %v278 = vrot.slane %v277, 1
        %v279 = vadd.f32 %v277, %v278
        %v280 = vlog2.pop %v279
        %v281 = vmul.f32 %v280, 0.6931472
        %v282 = vadd.f32 %v265, %v281
        %v283 = vsub.f32 %v251, %v282
        %v284 = vsub.f32 %v252, %v282
        %v285 = vstv %s250
        %vm286 = vcmp.le.f32.partialorder %v283, %v285
        %vm287 = vcmp.le.f32.partialorder %v284, %v285
        %v288 = vsel %vm286, 1, 0
        %v289 = vsel %vm287, 1, 0
        %v290 = vcvt.s32.f32 %v288
        %v291 = vcvt.s32.f32 %v289
        %v292 = vsel %vm257, %v291, 0.0
        %v293 = vadd.f32 %v290, %v292
        %v294 = vrot.slane %v293, 4
        %v295 = vadd.f32 %v293, %v294
        %v296 = vrot.slane %v295, 2
        %v297 = vadd.f32 %v295, %v296
        %v298 = vrot.slane %v297, 1
        %v299 = vadd.f32 %v297, %v298
        %v300 = vsub.f32 10.0, %v299
        %v301 = vlaneseq
        %v302 = vshrl.u32 %v301, 7
        %v303 = vadd.s32 %v302, 8
        %v304 = vlaneseq
        %v305 = vshrl.u32 %v304, 7
        %v306 = vsub.s32 0, %v305
        %v307 = vrot.slane %v253, %v306
        %vm308 = vcmp.eq.s32.totalorder %v302, %v307
        %vm309 = vcmp.eq.s32.totalorder %v303, %v307
        %v310 = vsel %vm308, %v283, 0.0
        %v311 = vsel %vm309, %v284, 0.0
        %v312 = vsel %vm257, %v311, 0.0
        %v313 = vadd.f32 %v310, %v312
        %v314 = vrot.slane %v313, 4
        %v315 = vadd.f32 %v313, %v314
        %v316 = vrot.slane %v315, 2
        %v317 = vadd.f32 %v315, %v316
        %v318 = vrot.slane %v317, 1
        %v319 = vadd.f32 %v317, %v318
        %v320 = vsub.f32 0.0, %v319
        %v321 = vmax.f32 %v320, 0.0
        %v322 = vmul.f32 %v319, 1.442695
        %v323 = vpow.pop %v322
        %v324 = vpow.f32 %v321, 0.65
        %v325 = vsub.f32 1.0, %v323
        %v326 = vmul.f32 %v324, %v325
        %v327 = vmul.f32 %v256, %v299
        %v328 = vmul.f32 %v256, %v300
        %v329 = vmul.f32 %v328, %v326
        %v331 = vlaneseq
        %v332 = vshrl.u32 %v331, 7
        %v333 = vsub.s32 0, %v332
        %v334 = vrot.slane %v328, %v333
        %v337 = vlaneseq
        %v338 = vshrl.u32 %v337, 7
        %v339 = vsub.s32 0, %v338
        %v340 = vrot.slane %v329, %v339
        %vm342 = vcmask 1040384
        %v343 = vsel %vm342, %v327, %v334
        %v344 = vsel %vm257, %v343, %v340
        %v345 = vld [vmem:[%s244] sm:$0x7]
        %v346 = vadd.f32 %v345, %v344
        %347 = vst [vmem:[%s244] sm:$0x7] %v346
        %p348 = scmp.lt.s32.totalorder %s19, 1
        %s349 = scalar_select %p348, %s19, 1
        %s350 = smul.addr %s349, 4
        %s351 = scalar_lea.vmem %s3, %s350
        // Predicated region
        $region75: #{rcll_loss.1} parent=65 // pred_check
          %p352 = pneg %p122
        $region76: #{rcll_loss.1} parent=65 // pred_check_branch
          %354 = sbr.rel (%p352) target = $region78
        $region77: #{rcll_loss.1} parent=65 // pred_region
          _
        $region78: #{rcll_loss.1} parent=65 // pred_fallthru
          _
      $region66: #{rcll_loss.1} parent=5 // pred_fallthru
        _
      %p355 = scmp.le.s32.totalorder 2, %s10
      // Predicated region
      $region79: #{rcll_loss.1} parent=5 // pred_check
        %p356 = pneg %p355
      $region80: #{rcll_loss.1} parent=5 // pred_check_branch
        %358 = sbr.rel (%p356) target = $region82
      $region81: #{rcll_loss.1} parent=5 // pred_region
        %s359 = ssub.s32 %s10, 2
        // Predicated region
        $region83: #{rcll_loss.1} parent=81 // pred_check
          %p360 = pneg %p128
        $region84: #{rcll_loss.1} parent=81 // pred_check_branch
          %362 = sbr.rel (%p360) target = $region86
        $region85: #{rcll_loss.1} parent=81 // pred_region
          %p363 = scmp.lt.s32.totalorder %s21, 1
          %s364 = scalar_select %p363, %s21, 1
          %s365 = smul.addr %s364, 4
          %s366 = scalar_lea.vmem %s3, %s365
        $region86: #{rcll_loss.1} parent=81 // pred_fallthru
          _
      $region82: #{rcll_loss.1} parent=5 // pred_fallthru
        _
    $region6: #{rcll_loss.1} parent=1 // loop_footer
      %s14 = sadd.s32 1, %s10
    $region7: #{rcll_loss.1} parent=1 // loop_footer_branch
      %9 = sbr.rel target = $region3
    $region8: #{rcll_loss.1} parent=1 // loop_exit
      _

</llo_original>
